<compile_context>
chip_gen: v7x
topology: tpu7x:2x2x1
jax: 0.10.0
libtpu: 0.0.40
codegen_flags: <defaults>
</compile_context>

<pallas_src>
import math

import jax
import jax.numpy as jnp
from jax import lax
from jax.experimental import pallas as pl
from jax.experimental.pallas import tpu as pltpu


def _gcn_kernel(x_ref, adj_ref, w1t_ref, b1_ref, w2t_ref, b2_ref, out_ref):
    """Channel-major GCN forward for a block of `bb` batch elements.

    x_ref:   (bb, nfeat, N)     adj_ref: (bb, N, N)
    w1t_ref: (nhid, nfeat)      b1_ref:  (nhid, 1)
    w2t_ref: (nclass, nhid)     b2_ref:  (nclass, 1)
    out_ref: (bb, nclass, N)    (channel-major; lane dim = N)
    """
    bb = x_ref.shape[0]
    nhid, nfeat = w1t_ref.shape
    nclass = w2t_ref.shape[0]

    # Hoist weight / bias loads out of the (static) batch loop.
    w1t = w1t_ref[...]
    w2t = w2t_ref[...]
    b1 = b1_ref[...]
    b2 = b2_ref[...]

    def mm(a, b):  # a @ b with f32 accumulation
        return jnp.dot(a, b, preferred_element_type=jnp.float32)

    def mm_t(a, b):  # a @ b.T (contract last dims of both) with f32 accumulation
        return lax.dot_general(a, b, (((1,), (1,)), ((), ())),
                               preferred_element_type=jnp.float32)

    for i in range(bb):  # bb is 1 or B (tiny) -> static unroll
        xb = x_ref[i]    # (nfeat, N)
        ab = adj_ref[i]  # (N, N)

        # --- gc1: relu(adj @ (x @ W1) + b1), computed in transposed layout ---
        if nfeat <= nhid:                       # contract adj via the small dim
            ax = mm_t(xb, ab)                   # (nfeat, N)  = (adj @ x)^T
            h = mm(w1t.astype(ax.dtype), ax)    # (nhid, N)
        else:
            s1 = mm(w1t.astype(xb.dtype), xb)   # (nhid, N)   = (x @ W1)^T
            h = mm_t(s1.astype(ab.dtype), ab)   # (nhid, N)
        h = jnp.maximum(h + b1, 0.0)

        # (dropout == identity in eval mode)

        # --- gc2: relu(adj @ (h @ W2) + b2), computed in transposed layout ---
        if nclass <= nhid:                      # contract adj via the small dim
            s2 = mm(w2t.astype(h.dtype), h)     # (nclass, N) = (h @ W2)^T
            o = mm_t(s2.astype(ab.dtype), ab)   # (nclass, N)
        else:
            ha = mm_t(h.astype(ab.dtype), ab)   # (nhid, N)
            o = mm(w2t.astype(ha.dtype), ha)    # (nclass, N)
        out_ref[i] = jnp.maximum(o + b2, 0.0)


def _tensorcores_per_chip():
    """2 on v7x-class chips (2 TCs), else 1 (v5e/v6e)."""
    try:
        kind = jax.devices()[0].device_kind.lower()
    except Exception:  # pragma: no cover - defensive
        return 1
    return 2 if ("v7" in kind or "7x" in kind) else 1


def gcn_forward(x, adj, w1, b1, w2, b2, *, use_bf16=False):
    """x: (B, C, H, W), adj: (B, 1, N, N) with N = H*W.  Returns (B, N, nclass)."""
    B, C, H, W = x.shape
    N = H * W
    nhid = w1.shape[1]
    nclass = w2.shape[1]

    # Channel-major node features (B, C, N): no wrapper transpose needed.
    x_cm = x.reshape(B, C, N)
    adj_sq = adj.reshape(B, N, N)
    w1t = jnp.transpose(w1)                       # (nhid, C)     -- tiny
    w2t = jnp.transpose(w2)                       # (nclass, nhid)
    b1c = b1.reshape(nhid, 1).astype(jnp.float32)
    b2c = b2.reshape(nclass, 1).astype(jnp.float32)

    if use_bf16:
        # bf16 MXU inputs / halved adj DMA; accumulation & bias stay f32.
        x_cm = x_cm.astype(jnp.bfloat16)
        adj_sq = adj_sq.astype(jnp.bfloat16)
        w1t = w1t.astype(jnp.bfloat16)
        w2t = w2t.astype(jnp.bfloat16)

    # Batch tiling: shard batch across TensorCores on multi-TC chips (v7x);
    # otherwise fold the whole (tiny) batch into one grid step to avoid the
    # ~0.35us-per-step pipeline overhead on single-TC chips (v5e/v6e).
    bb = 1 if (_tensorcores_per_chip() > 1 and B > 1) else B
    grid = (B // bb,)

    out_cm = pl.pallas_call(
        _gcn_kernel,
        out_shape=jax.ShapeDtypeStruct((B, nclass, N), jnp.float32),
        grid_spec=pltpu.PrefetchScalarGridSpec(
            num_scalar_prefetch=0,
            grid=grid,
            in_specs=[
                pl.BlockSpec((bb, C, N), lambda g: (g, 0, 0)),
                pl.BlockSpec((bb, N, N), lambda g: (g, 0, 0)),
                pl.BlockSpec((nhid, C), lambda g: (0, 0)),
                pl.BlockSpec((nhid, 1), lambda g: (0, 0)),
                pl.BlockSpec((nclass, nhid), lambda g: (0, 0)),
                pl.BlockSpec((nclass, 1), lambda g: (0, 0)),
            ],
            out_specs=pl.BlockSpec((bb, nclass, N), lambda g: (g, 0, 0)),
        ),
        compiler_params=pltpu.CompilerParams(
            dimension_semantics=("parallel",)),
    )(x_cm, adj_sq, w1t, b1c, w2t, b2c)

    # Back to the PyTorch module's (B, N, nclass) layout.  Tiny XLA transpose,
    # kept OUTSIDE the kernel so in-kernel stores stay lane-dense.
    return jnp.transpose(out_cm, (0, 2, 1))


def init_gcn_params(key, nfeat, nhid, nclass):
    """Deterministic init matching GraphConvolution.reset_parameters."""
    k1, k2, k3, k4 = jax.random.split(key, 4)
    std1 = 1.0 / math.sqrt(nhid)
    std2 = 1.0 / math.sqrt(nclass)
    w1 = jax.random.uniform(k1, (nfeat, nhid), jnp.float32, -std1, std1)
    b1 = jax.random.uniform(k2, (nhid,), jnp.float32, -std1, std1)
    w2 = jax.random.uniform(k3, (nhid, nclass), jnp.float32, -std2, std2)
    b2 = jax.random.uniform(k4, (nclass,), jnp.float32, -std2, std2)
    return w1, b1, w2, b2


def gcn_reference(x, adj, w1, b1, w2, b2):
    """Pure-JAX reference mirroring the PyTorch forward (high precision)."""
    B, C, H, W = x.shape
    N = H * W
    hp = jax.lax.Precision.HIGHEST
    xn = jnp.transpose(x.reshape(B, C, N), (0, 2, 1))     # (B, N, C)
    a = adj.reshape(B, N, N)
    s1 = jnp.einsum("bnf,fh->bnh", xn, w1, precision=hp)
    h = jnp.maximum(jnp.einsum("bnm,bmh->bnh", a, s1, precision=hp) + b1, 0.0)
    s2 = jnp.einsum("bnh,hc->bnc", h, w2, precision=hp)
    o = jnp.einsum("bnm,bmc->bnc", a, s2, precision=hp) + b2
    return jnp.maximum(o, 0.0)


if __name__ == "__main__":
    key = jax.random.PRNGKey(0)
    kx, ka, kp = jax.random.split(key, 3)

    B, C, H, W = 2, 4, 16, 16     # nfeat = C = 4
    N = H * W                     # 256 nodes
    nhid, nclass = 32, 8
    dropout = 0.5                 # identity in eval mode

    x = jax.random.normal(kx, (B, C, H, W), jnp.float32)
    adj_raw = jax.random.uniform(ka, (B, 1, N, N), jnp.float32)
    adj = adj_raw / jnp.sum(adj_raw, axis=-1, keepdims=True)  # row-normalized

    w1, b1, w2, b2 = init_gcn_params(kp, C, nhid, nclass)

    ref = gcn_reference(x, adj, w1, b1, w2, b2)

    # f32 path (default)
    out = gcn_forward(x, adj, w1, b1, w2, b2)
    out = jax.block_until_ready(out)
    assert out.shape == (B, N, nclass)
    assert jnp.allclose(out, ref, atol=1e-3, rtol=1e-3), float(
        jnp.max(jnp.abs(out - ref)))

    # bf16-input path (perf option): looser tolerance, adj values ~2^-8.
    out_bf16 = gcn_forward(x, adj, w1, b1, w2, b2, use_bf16=True)
    out_bf16 = jax.block_until_ready(out_bf16)
    assert jnp.allclose(out_bf16, ref, atol=2e-2, rtol=2e-2), float(
        jnp.max(jnp.abs(out_bf16 - ref)))

    print("KERNEL_OK")
</pallas_src>

<mosaic_0001>
module attributes {stable_mosaic.version = 11 : i64} {
  func.func @_gcn_kernel(%arg0: i32, %arg1: memref<2x4x256xf32, #tpu.memory_space<vmem>>, %arg2: memref<2x256x256xf32, #tpu.memory_space<vmem>>, %arg3: memref<32x4xf32, #tpu.memory_space<vmem>>, %arg4: memref<32x1xf32, #tpu.memory_space<vmem>>, %arg5: memref<8x32xf32, #tpu.memory_space<vmem>>, %arg6: memref<8x1xf32, #tpu.memory_space<vmem>>, %arg7: memref<2x8x256xf32, #tpu.memory_space<vmem>>) attributes {dimension_semantics = [#tpu.dimension_semantics<parallel>], iteration_bounds = array<i64: 1>, scalar_prefetch = 0 : i64, scratch_operands = 0 : i64, tpu.core_type = #tpu.core_type<tc>, window_params = [{transform_indices = @transform_0, window_bounds = array<i64: 2, 4, 256>}, {transform_indices = @transform_1, window_bounds = array<i64: 2, 256, 256>}, {pipeline_mode = #tpu.pipeline_mode<synchronous>, transform_indices = @transform_2, window_bounds = array<i64: 32, 4>}, {pipeline_mode = #tpu.pipeline_mode<synchronous>, transform_indices = @transform_3, window_bounds = array<i64: 32, 1>}, {pipeline_mode = #tpu.pipeline_mode<synchronous>, transform_indices = @transform_4, window_bounds = array<i64: 8, 32>}, {pipeline_mode = #tpu.pipeline_mode<synchronous>, transform_indices = @transform_5, window_bounds = array<i64: 8, 1>}, {transform_indices = @transform_6, window_bounds = array<i64: 2, 8, 256>}]} {
    %c0 = arith.constant 0 : index
    %c0_0 = arith.constant 0 : index
    %0 = vector.load %arg3[%c0, %c0_0] : memref<32x4xf32, #tpu.memory_space<vmem>>, vector<32x4xf32>
    %c0_1 = arith.constant 0 : index
    %c0_2 = arith.constant 0 : index
    %1 = vector.load %arg5[%c0_1, %c0_2] : memref<8x32xf32, #tpu.memory_space<vmem>>, vector<8x32xf32>
    %c0_3 = arith.constant 0 : index
    %c0_4 = arith.constant 0 : index
    %2 = vector.load %arg4[%c0_3, %c0_4] : memref<32x1xf32, #tpu.memory_space<vmem>>, vector<32x1xf32>
    %c0_5 = arith.constant 0 : index
    %c0_6 = arith.constant 0 : index
    %3 = vector.load %arg6[%c0_5, %c0_6] : memref<8x1xf32, #tpu.memory_space<vmem>>, vector<8x1xf32>
    %c0_7 = arith.constant 0 : index
    %c0_8 = arith.constant 0 : index
    %c0_9 = arith.constant 0 : index
    %4 = vector.load %arg1[%c0_7, %c0_8, %c0_9] : memref<2x4x256xf32, #tpu.memory_space<vmem>>, vector<1x4x256xf32>
    %5 = vector.shape_cast %4 : vector<1x4x256xf32> to vector<4x256xf32>
    %c0_10 = arith.constant 0 : index
    %c0_11 = arith.constant 0 : index
    %c0_12 = arith.constant 0 : index
    %6 = vector.load %arg2[%c0_10, %c0_11, %c0_12] : memref<2x256x256xf32, #tpu.memory_space<vmem>>, vector<1x256x256xf32>
    %7 = vector.shape_cast %6 : vector<1x256x256xf32> to vector<256x256xf32>
    %cst = arith.constant dense<0.000000e+00> : vector<4x256xf32>
    %8 = tpu.matmul %5, %7, %cst {dimension_numbers = #tpu.dot_dimension_numbers<[1], [1], [0], [0], [0, 0, 1, 0], [], []>} : vector<4x256xf32>, vector<256x256xf32>, vector<4x256xf32> -> vector<4x256xf32>
    %cst_13 = arith.constant dense<0.000000e+00> : vector<32x256xf32>
    %9 = tpu.matmul %0, %8, %cst_13 {dimension_numbers = #tpu.dot_dimension_numbers<[1], [0], [0], [1], [0, 0, 1, 1], [], []>} : vector<32x4xf32>, vector<4x256xf32>, vector<32x256xf32> -> vector<32x256xf32>
    %10 = vector.broadcast %2 : vector<32x1xf32> to vector<32x256xf32>
    %11 = arith.addf %9, %10 : vector<32x256xf32>
    %cst_14 = arith.constant 0.000000e+00 : f32
    %12 = vector.broadcast %cst_14 : f32 to vector<32x256xf32>
    %13 = arith.maximumf %11, %12 : vector<32x256xf32>
    %cst_15 = arith.constant dense<0.000000e+00> : vector<8x256xf32>
    %14 = tpu.matmul %1, %13, %cst_15 {dimension_numbers = #tpu.dot_dimension_numbers<[1], [0], [0], [1], [0, 0, 1, 1], [], []>} : vector<8x32xf32>, vector<32x256xf32>, vector<8x256xf32> -> vector<8x256xf32>
    %cst_16 = arith.constant dense<0.000000e+00> : vector<8x256xf32>
    %15 = tpu.matmul %14, %7, %cst_16 {dimension_numbers = #tpu.dot_dimension_numbers<[1], [1], [0], [0], [0, 0, 1, 0], [], []>} : vector<8x256xf32>, vector<256x256xf32>, vector<8x256xf32> -> vector<8x256xf32>
    %16 = vector.broadcast %3 : vector<8x1xf32> to vector<8x256xf32>
    %17 = arith.addf %15, %16 : vector<8x256xf32>
    %cst_17 = arith.constant 0.000000e+00 : f32
    %18 = vector.broadcast %cst_17 : f32 to vector<8x256xf32>
    %19 = arith.maximumf %17, %18 : vector<8x256xf32>
    %c0_18 = arith.constant 0 : index
    %c0_19 = arith.constant 0 : index
    %c0_20 = arith.constant 0 : index
    %20 = vector.load %arg7[%c0_18, %c0_19, %c0_20] : memref<2x8x256xf32, #tpu.memory_space<vmem>>, vector<1x8x256xf32>
    %21 = vector.shape_cast %20 : vector<1x8x256xf32> to vector<8x256xf32>
    %22 = vector.shape_cast %19 : vector<8x256xf32> to vector<1x8x256xf32>
    tpu.vector_store %arg7[%c0_18, %c0_19, %c0_20], %22 {strides = array<i32>} : memref<2x8x256xf32, #tpu.memory_space<vmem>>, vector<1x8x256xf32>,
    %c1 = arith.constant 1 : index
    %c0_21 = arith.constant 0 : index
    %c0_22 = arith.constant 0 : index
    %23 = vector.load %arg1[%c1, %c0_21, %c0_22] : memref<2x4x256xf32, #tpu.memory_space<vmem>>, vector<1x4x256xf32>
    %24 = vector.shape_cast %23 : vector<1x4x256xf32> to vector<4x256xf32>
    %c1_23 = arith.constant 1 : index
    %c0_24 = arith.constant 0 : index
    %c0_25 = arith.constant 0 : index
    %25 = vector.load %arg2[%c1_23, %c0_24, %c0_25] : memref<2x256x256xf32, #tpu.memory_space<vmem>>, vector<1x256x256xf32>
    %26 = vector.shape_cast %25 : vector<1x256x256xf32> to vector<256x256xf32>
    %cst_26 = arith.constant dense<0.000000e+00> : vector<4x256xf32>
    %27 = tpu.matmul %24, %26, %cst_26 {dimension_numbers = #tpu.dot_dimension_numbers<[1], [1], [0], [0], [0, 0, 1, 0], [], []>} : vector<4x256xf32>, vector<256x256xf32>, vector<4x256xf32> -> vector<4x256xf32>
    %cst_27 = arith.constant dense<0.000000e+00> : vector<32x256xf32>
    %28 = tpu.matmul %0, %27, %cst_27 {dimension_numbers = #tpu.dot_dimension_numbers<[1], [0], [0], [1], [0, 0, 1, 1], [], []>} : vector<32x4xf32>, vector<4x256xf32>, vector<32x256xf32> -> vector<32x256xf32>
    %29 = vector.broadcast %2 : vector<32x1xf32> to vector<32x256xf32>
    %30 = arith.addf %28, %29 : vector<32x256xf32>
    %cst_28 = arith.constant 0.000000e+00 : f32
    %31 = vector.broadcast %cst_28 : f32 to vector<32x256xf32>
    %32 = arith.maximumf %30, %31 : vector<32x256xf32>
    %cst_29 = arith.constant dense<0.000000e+00> : vector<8x256xf32>
    %33 = tpu.matmul %1, %32, %cst_29 {dimension_numbers = #tpu.dot_dimension_numbers<[1], [0], [0], [1], [0, 0, 1, 1], [], []>} : vector<8x32xf32>, vector<32x256xf32>, vector<8x256xf32> -> vector<8x256xf32>
    %cst_30 = arith.constant dense<0.000000e+00> : vector<8x256xf32>
    %34 = tpu.matmul %33, %26, %cst_30 {dimension_numbers = #tpu.dot_dimension_numbers<[1], [1], [0], [0], [0, 0, 1, 0], [], []>} : vector<8x256xf32>, vector<256x256xf32>, vector<8x256xf32> -> vector<8x256xf32>
    %35 = vector.broadcast %3 : vector<8x1xf32> to vector<8x256xf32>
    %36 = arith.addf %34, %35 : vector<8x256xf32>
    %cst_31 = arith.constant 0.000000e+00 : f32
    %37 = vector.broadcast %cst_31 : f32 to vector<8x256xf32>
    %38 = arith.maximumf %36, %37 : vector<8x256xf32>
    %c1_32 = arith.constant 1 : index
    %c0_33 = arith.constant 0 : index
    %c0_34 = arith.constant 0 : index
    %39 = vector.load %arg7[%c1_32, %c0_33, %c0_34] : memref<2x8x256xf32, #tpu.memory_space<vmem>>, vector<1x8x256xf32>
    %40 = vector.shape_cast %39 : vector<1x8x256xf32> to vector<8x256xf32>
    %41 = vector.shape_cast %38 : vector<8x256xf32> to vector<1x8x256xf32>
    tpu.vector_store %arg7[%c1_32, %c0_33, %c0_34], %41 {strides = array<i32>} : memref<2x8x256xf32, #tpu.memory_space<vmem>>, vector<1x8x256xf32>,
    return
  }
  func.func @transform_0(%arg0: i32) -> (i32, i32, i32) {
    %c0_i32 = arith.constant 0 : i32
    %c0_i32_0 = arith.constant 0 : i32
    %c0_i32_1 = arith.constant 0 : i32
    return %arg0, %c0_i32, %c0_i32_0 : i32, i32, i32
  }
  func.func @transform_1(%arg0: i32) -> (i32, i32, i32) {
    %c0_i32 = arith.constant 0 : i32
    %c0_i32_0 = arith.constant 0 : i32
    %c0_i32_1 = arith.constant 0 : i32
    return %arg0, %c0_i32, %c0_i32_0 : i32, i32, i32
  }
  func.func @transform_2(%arg0: i32) -> (i32, i32) {
    %c0_i32 = arith.constant 0 : i32
    %c0_i32_0 = arith.constant 0 : i32
    %c0_i32_1 = arith.constant 0 : i32
    return %c0_i32, %c0_i32_0 : i32, i32
  }
  func.func @transform_3(%arg0: i32) -> (i32, i32) {
    %c0_i32 = arith.constant 0 : i32
    %c0_i32_0 = arith.constant 0 : i32
    %c0_i32_1 = arith.constant 0 : i32
    return %c0_i32, %c0_i32_0 : i32, i32
  }
  func.func @transform_4(%arg0: i32) -> (i32, i32) {
    %c0_i32 = arith.constant 0 : i32
    %c0_i32_0 = arith.constant 0 : i32
    %c0_i32_1 = arith.constant 0 : i32
    return %c0_i32, %c0_i32_0 : i32, i32
  }
  func.func @transform_5(%arg0: i32) -> (i32, i32) {
    %c0_i32 = arith.constant 0 : i32
    %c0_i32_0 = arith.constant 0 : i32
    %c0_i32_1 = arith.constant 0 : i32
    return %c0_i32, %c0_i32_0 : i32, i32
  }
  func.func @transform_6(%arg0: i32) -> (i32, i32, i32) {
    %c0_i32 = arith.constant 0 : i32
    %c0_i32_0 = arith.constant 0 : i32
    %c0_i32_1 = arith.constant 0 : i32
    return %arg0, %c0_i32, %c0_i32_0 : i32, i32, i32
  }
}

</mosaic_0001>

<llo_original>
// kernel: tpu_custom_call.1
$region0: #{tpu_custom_call.1}
  #allocation0 [shape = 'u32[]', space=smem, size = 0x4, offset = 0x4, fixed_abs, tag = 'smem constant byte address 0x4 - core index']
  #allocation1 [shape = 'u32[144,128]{1,0:T(1,128)}', space=vmem, size = 0x12000, scoped, tag = 'internal scratch']
  %s0 = inlined_call_operand.vmem [shape: f32[2,4,256], index: 0, kind: input, shape index: {}]
  %s1 = inlined_call_operand.hbm [shape: f32[2,256,256], index: 1, kind: input, shape index: {}]
  %s2 = inlined_call_operand.vmem [shape: f32[32,4], index: 2, kind: input, shape index: {}]
  %s3 = inlined_call_operand.vmem [shape: f32[32,1], index: 3, kind: input, shape index: {}]
  %s4 = inlined_call_operand.vmem [shape: f32[8,32], index: 4, kind: input, shape index: {}]
  %s5 = inlined_call_operand.vmem [shape: f32[8,1], index: 5, kind: input, shape index: {}]
  %s6 = inlined_call_operand.hbm [shape: f32[2,8,256], index: 6, kind: output, shape index: {}]
  %s7 = sld [smem:[#allocation0]]
  $region38: #{tpu_custom_call.1} parent=0
    _
  %s9 = ssub.s32 1, %s7
  %s10 = scalar_select 0, %s9, %s7
  $region1: #{tpu_custom_call.1} parent=0
    #allocation2 [shape = 'u8[524288]{0}', space=vmem, size = 0x80000, scoped, tag = 'input window, operand 1, single buffered']
    #allocation3 [shape = 's32[1]{0}', space=sflag, size = 0x4, scoped, tag = 'scoped memory for tpu_custom_call.1']
    #allocation4 [shape = 's32[1]{0}', space=sflag, size = 0x4, scoped, tag = 'scoped memory for tpu_custom_call.1']
    #allocation5 [shape = 'u8[16384]{0}', space=vmem, size = 0x4000, scoped, tag = 'output window, operand 0, single buffered']
    %11 = vsyncpa [#allocation3], 0
    %12 = vsyncpa [#allocation4], 0
    // Predicated region
    $region2: #{tpu_custom_call.1} parent=1 // pred_check
      _
    $region3: #{tpu_custom_call.1} parent=1 // pred_check_branch
      %14 = sbr.rel (0) target = $region5
    $region4: #{tpu_custom_call.1} parent=1 // pred_region
      _
    $region5: #{tpu_custom_call.1} parent=1 // pred_fallthru
      _
    // Predicated region
    $region6: #{tpu_custom_call.1} parent=1 // pred_check
      _
    $region7: #{tpu_custom_call.1} parent=1 // pred_check_branch
      %16 = sbr.rel (0) target = $region9
    $region8: #{tpu_custom_call.1} parent=1 // pred_region
      %s18 = ssub.s32 16384, 16384
      %19 = vsyncadd [#allocation3], %s18
      %s20 = sshll.u32 [#allocation2], 4
      %s21 = int_to_ptr.vmem [resolvable:$true] %s20
      %26 = dma.hbm_to_vmem [thread:$0]  %s1, 16384, %s21, [#allocation3], 256, 256, 16
    $region9: #{tpu_custom_call.1} parent=1 // pred_fallthru
      _
    // Predicated region
    $region10: #{tpu_custom_call.1} parent=1 // pred_check
      _
    $region11: #{tpu_custom_call.1} parent=1 // pred_check_branch
      %28 = sbr.rel (0) target = $region13
    $region12: #{tpu_custom_call.1} parent=1 // pred_region
      _
    $region13: #{tpu_custom_call.1} parent=1 // pred_fallthru
      _
    // Predicated region
    $region14: #{tpu_custom_call.1} parent=1 // pred_check
      _
    $region15: #{tpu_custom_call.1} parent=1 // pred_check_branch
      %30 = sbr.rel (0) target = $region17
    $region16: #{tpu_custom_call.1} parent=1 // pred_region
      _
    $region17: #{tpu_custom_call.1} parent=1 // pred_fallthru
      _
    // Predicated region
    $region18: #{tpu_custom_call.1} parent=1 // pred_check
      _
    $region19: #{tpu_custom_call.1} parent=1 // pred_check_branch
      %32 = sbr.rel (0) target = $region21
    $region20: #{tpu_custom_call.1} parent=1 // pred_region
      _
    $region21: #{tpu_custom_call.1} parent=1 // pred_fallthru
      _
    // Predicated region
    $region22: #{tpu_custom_call.1} parent=1 // pred_check
      _
    $region23: #{tpu_custom_call.1} parent=1 // pred_check_branch
      %34 = sbr.rel (0) target = $region25
    $region24: #{tpu_custom_call.1} parent=1 // pred_region
      _
    $region25: #{tpu_custom_call.1} parent=1 // pred_fallthru
      _
    // Predicated region
    $region26: #{tpu_custom_call.1} parent=1 // pred_check
      _
    $region27: #{tpu_custom_call.1} parent=1 // pred_check_branch
      %36 = sbr.rel (0) target = $region29
    $region28: #{tpu_custom_call.1} parent=1 // pred_region
      %37 = dma.done [#allocation3], 16384
    $region29: #{tpu_custom_call.1} parent=1 // pred_fallthru
      _
    %v38 = vld [vmem:[%s2] sm:$0xff]
    %v39 = vld [vmem:[%s2 + $0x8] sm:$0xff]
    %v40 = vld [vmem:[%s2 + $0x10] sm:$0xff]
    %v41 = vld [vmem:[%s2 + $0x18] sm:$0xff]
    %v42 = vld [vmem:[%s4] sm:$0xff]
    %v43 = vld [vmem:[%s3] sm:$0xff]
    %v44 = vld [vmem:[%s3 + $0x8] sm:$0xff]
    %v45 = vld [vmem:[%s3 + $0x10] sm:$0xff]
    %v46 = vld [vmem:[%s3 + $0x18] sm:$0xff]
    %v47 = vld [vmem:[%s5] sm:$0xff]
    %v48 = vld [vmem:[%s0] sm:$0xff]
    %v49 = vld [vmem:[#allocation2] sm:$0xff]
    %v50 = vld [vmem:[#allocation2 + $0x8] sm:$0xff]
    %v51 = vld [vmem:[#allocation2 + $0x10] sm:$0xff]
    %v52 = vld [vmem:[#allocation2 + $0x18] sm:$0xff]
    %v53 = vld [vmem:[#allocation2 + $0x20] sm:$0xff]
    %v54 = vld [vmem:[#allocation2 + $0x28] sm:$0xff]
    %v55 = vld [vmem:[#allocation2 + $0x30] sm:$0xff]
    %v56 = vld [vmem:[#allocation2 + $0x38] sm:$0xff]
    %v57 = vld [vmem:[#allocation2 + $0x40] sm:$0xff]
    %v58 = vld [vmem:[#allocation2 + $0x48] sm:$0xff]
    %v59 = vld [vmem:[#allocation2 + $0x50] sm:$0xff]
    %v60 = vld [vmem:[#allocation2 + $0x58] sm:$0xff]
    %v61 = vld [vmem:[#allocation2 + $0x60] sm:$0xff]
    %v62 = vld [vmem:[#allocation2 + $0x68] sm:$0xff]
    %v63 = vld [vmem:[#allocation2 + $0x70] sm:$0xff]
    %v64 = vld [vmem:[#allocation2 + $0x78] sm:$0xff]
    %v65 = vld [vmem:[#allocation2 + $0x80] sm:$0xff]
    %v66 = vld [vmem:[#allocation2 + $0x88] sm:$0xff]
    %v67 = vld [vmem:[#allocation2 + $0x90] sm:$0xff]
    %v68 = vld [vmem:[#allocation2 + $0x98] sm:$0xff]
    %v69 = vld [vmem:[#allocation2 + $0xa0] sm:$0xff]
    %v70 = vld [vmem:[#allocation2 + $0xa8] sm:$0xff]
    %v71 = vld [vmem:[#allocation2 + $0xb0] sm:$0xff]
    %v72 = vld [vmem:[#allocation2 + $0xb8] sm:$0xff]
    %v73 = vld [vmem:[#allocation2 + $0xc0] sm:$0xff]
    %v74 = vld [vmem:[#allocation2 + $0xc8] sm:$0xff]
    %v75 = vld [vmem:[#allocation2 + $0xd0] sm:$0xff]
    %v76 = vld [vmem:[#allocation2 + $0xd8] sm:$0xff]
    %v77 = vld [vmem:[#allocation2 + $0xe0] sm:$0xff]
    %v78 = vld [vmem:[#allocation2 + $0xe8] sm:$0xff]
    %v79 = vld [vmem:[#allocation2 + $0xf0] sm:$0xff]
    %v80 = vld [vmem:[#allocation2 + $0xf8] sm:$0xff]
    %v81 = vld [vmem:[#allocation2 + $0x100] sm:$0xff]
    %v82 = vld [vmem:[#allocation2 + $0x108] sm:$0xff]
    %v83 = vld [vmem:[#allocation2 + $0x110] sm:$0xff]
    %v84 = vld [vmem:[#allocation2 + $0x118] sm:$0xff]
    %v85 = vld [vmem:[#allocation2 + $0x120] sm:$0xff]
    %v86 = vld [vmem:[#allocation2 + $0x128] sm:$0xff]
    %v87 = vld [vmem:[#allocation2 + $0x130] sm:$0xff]
    %v88 = vld [vmem:[#allocation2 + $0x138] sm:$0xff]
    %v89 = vld [vmem:[#allocation2 + $0x140] sm:$0xff]
    %v90 = vld [vmem:[#allocation2 + $0x148] sm:$0xff]
    %v91 = vld [vmem:[#allocation2 + $0x150] sm:$0xff]
    %v92 = vld [vmem:[#allocation2 + $0x158] sm:$0xff]
    %v93 = vld [vmem:[#allocation2 + $0x160] sm:$0xff]
    %v94 = vld [vmem:[#allocation2 + $0x168] sm:$0xff]
    %v95 = vld [vmem:[#allocation2 + $0x170] sm:$0xff]
    %v96 = vld [vmem:[#allocation2 + $0x178] sm:$0xff]
    %v97 = vld [vmem:[#allocation2 + $0x180] sm:$0xff]
    %v98 = vld [vmem:[#allocation2 + $0x188] sm:$0xff]
    %v99 = vld [vmem:[#allocation2 + $0x190] sm:$0xff]
    %v100 = vld [vmem:[#allocation2 + $0x198] sm:$0xff]
    %v101 = vld [vmem:[#allocation2 + $0x1a0] sm:$0xff]
    %v102 = vld [vmem:[#allocation2 + $0x1a8] sm:$0xff]
    %v103 = vld [vmem:[#allocation2 + $0x1b0] sm:$0xff]
    %v104 = vld [vmem:[#allocation2 + $0x1b8] sm:$0xff]
    %v105 = vld [vmem:[#allocation2 + $0x1c0] sm:$0xff]
    %v106 = vld [vmem:[#allocation2 + $0x1c8] sm:$0xff]
    %v107 = vld [vmem:[#allocation2 + $0x1d0] sm:$0xff]
    %v108 = vld [vmem:[#allocation2 + $0x1d8] sm:$0xff]
    %v109 = vld [vmem:[#allocation2 + $0x1e0] sm:$0xff]
    %v110 = vld [vmem:[#allocation2 + $0x1e8] sm:$0xff]
    %v111 = vld [vmem:[#allocation2 + $0x1f0] sm:$0xff]
    %v112 = vld [vmem:[#allocation2 + $0x1f8] sm:$0xff]
    %v114 = vcombine.high %v48, %v48
    %116 = vmatprep.subr.mxu0 %v50
    %117 = vmatpush1.xpose.msra.mxu0 %v49
    %118 = vmatprep.subr.mxu0 %v52
    %119 = vmatpush1.xpose.msra.mxu0 %v51
    %120 = vmatprep.subr.mxu0 %v54
    %121 = vmatpush1.xpose.msra.mxu0 %v53
    %122 = vmatprep.subr.mxu0 %v56
    %123 = vmatpush1.xpose.msra.mxu0 %v55
    %124 = vmatprep.subr.mxu0 %v58
    %125 = vmatpush1.xpose.msra.mxu0 %v57
    %126 = vmatprep.subr.mxu0 %v60
    %127 = vmatpush1.xpose.msra.mxu0 %v59
    %128 = vmatprep.subr.mxu0 %v62
    %129 = vmatpush1.xpose.msra.mxu0 %v61
    %130 = vmatprep.subr.mxu0 %v64
    %131 = vmatpush1.xpose.msra.mxu0 %v63
    %132 = vmatprep.subr.mxu0 %v66
    %133 = vmatpush1.xpose.msra.mxu0 %v65
    %134 = vmatprep.subr.mxu0 %v68
    %135 = vmatpush1.xpose.msra.mxu0 %v67
    %136 = vmatprep.subr.mxu0 %v70
    %137 = vmatpush1.xpose.msra.mxu0 %v69
    %138 = vmatprep.subr.mxu0 %v72
    %139 = vmatpush1.xpose.msra.mxu0 %v71
    %140 = vmatprep.subr.mxu0 %v74
    %141 = vmatpush1.xpose.msra.mxu0 %v73
    %142 = vmatprep.subr.mxu0 %v76
    %143 = vmatpush1.xpose.msra.mxu0 %v75
    %144 = vmatprep.subr.mxu0 %v78
    %145 = vmatpush1.xpose.msra.mxu0 %v77
    %146 = vmatprep.subr.mxu0 %v80
    %147 = vmatpush1.xpose.msra.mxu0 %v79
    %148 = vmatprep.subr.mxu0 %v82
    %149 = vmatpush1.xpose.msra.mxu0 %v81
    %150 = vmatprep.subr.mxu0 %v84
    %151 = vmatpush1.xpose.msra.mxu0 %v83
    %152 = vmatprep.subr.mxu0 %v86
    %153 = vmatpush1.xpose.msra.mxu0 %v85
    %154 = vmatprep.subr.mxu0 %v88
    %155 = vmatpush1.xpose.msra.mxu0 %v87
    %156 = vmatprep.subr.mxu0 %v90
    %157 = vmatpush1.xpose.msra.mxu0 %v89
    %158 = vmatprep.subr.mxu0 %v92
    %159 = vmatpush1.xpose.msra.mxu0 %v91
    %160 = vmatprep.subr.mxu0 %v94
    %161 = vmatpush1.xpose.msra.mxu0 %v93
    %162 = vmatprep.subr.mxu0 %v96
    %163 = vmatpush1.xpose.msra.mxu0 %v95
    %164 = vmatprep.subr.mxu0 %v98
    %165 = vmatpush1.xpose.msra.mxu0 %v97
    %166 = vmatprep.subr.mxu0 %v100
    %167 = vmatpush1.xpose.msra.mxu0 %v99
    %168 = vmatprep.subr.mxu0 %v102
    %169 = vmatpush1.xpose.msra.mxu0 %v101
    %170 = vmatprep.subr.mxu0 %v104
    %171 = vmatpush1.xpose.msra.mxu0 %v103
    %172 = vmatprep.subr.mxu0 %v106
    %173 = vmatpush1.xpose.msra.mxu0 %v105
    %174 = vmatprep.subr.mxu0 %v108
    %175 = vmatpush1.xpose.msra.mxu0 %v107
    %176 = vmatprep.subr.mxu0 %v110
    %177 = vmatpush1.xpose.msra.mxu0 %v109
    %178 = vmatprep.subr.mxu0 %v112
    %179 = vmatpush1.xpose.msra.mxu0 %v111
    %180 = vmatprep.mubr.f32.mxu0 %v114
    %181 = vmatmul.mubr.f32.gmra.mrb[0].mxu0 %v48
    %v182 = vpop.f32.mrb[0].mxu0
    %v183 = vadd.f32 0.0, %v182
    %v184 = vpop.f32.mrb[0].mxu0
    %v185 = vadd.f32 0.0, %v184
    %186 = vdwg.mxu0
    %188 = vset.pattern.permute.xlu0 0
    %189 = vperm.xlu0 %188, %v43
    %v190 = vpop.permute.xlu0 %189
    %193 = vset.pattern.permute.xlu0 0
    %194 = vperm.xlu0 %193, %v44
    %v195 = vpop.permute.xlu0 %194
    %198 = vset.pattern.permute.xlu0 0
    %199 = vperm.xlu0 %198, %v45
    %v200 = vpop.permute.xlu0 %199
    %203 = vset.pattern.permute.xlu0 0
    %204 = vperm.xlu0 %203, %v46
    %v205 = vpop.permute.xlu0 %204
    %vm207 = vcmask 31744
    %v209 = vsel %vm207, %v38, 0
    %v212 = vsel %vm207, %v39, 0
    %v215 = vsel %vm207, %v40, 0
    %v218 = vsel %vm207, %v41, 0
    %vm220 = vcmask 1043456
    %v222 = vsel %vm220, %v183, 0
    %v225 = vsel %vm220, %v185, 0
    %227 = vmatprep.subr.mxu0 %v225
    %228 = vmatpush1.msra.mxu0 %v222
    %229 = vmatprep.subr.mxu0 0.0
    %230 = vmatpush1.msra.mxu0 0.0
    %231 = vmatprep.subr.mxu0 0.0
    %232 = vmatpush1.msra.mxu0 0.0
    %233 = vmatprep.subr.mxu0 0.0
    %234 = vmatpush1.msra.mxu0 0.0
    %235 = vmatprep.subr.mxu0 0.0
    %236 = vmatpush1.msra.mxu0 0.0
    %237 = vmatprep.subr.mxu0 0.0
    %238 = vmatpush1.msra.mxu0 0.0
    %239 = vmatprep.subr.mxu0 0.0
    %240 = vmatpush1.msra.mxu0 0.0
    %241 = vmatprep.subr.mxu0 0.0
    %242 = vmatpush1.msra.mxu0 0.0
    %243 = vmatprep.subr.mxu0 0.0
    %244 = vmatpush1.msra.mxu0 0.0
    %245 = vmatprep.subr.mxu0 0.0
    %246 = vmatpush1.msra.mxu0 0.0
    %247 = vmatprep.subr.mxu0 0.0
    %248 = vmatpush1.msra.mxu0 0.0
    %249 = vmatprep.subr.mxu0 0.0
    %250 = vmatpush1.msra.mxu0 0.0
    %251 = vmatprep.subr.mxu0 0.0
    %252 = vmatpush1.msra.mxu0 0.0
    %253 = vmatprep.subr.mxu0 0.0
    %254 = vmatpush1.msra.mxu0 0.0
    %255 = vmatprep.subr.mxu0 0.0
    %256 = vmatpush1.msra.mxu0 0.0
    %257 = vmatprep.subr.mxu0 0.0
    %258 = vmatpush1.msra.mxu0 0.0
    %259 = vmatprep.subr.mxu0 0.0
    %260 = vmatpush1.msra.mxu0 0.0
    %261 = vmatprep.subr.mxu0 0.0
    %262 = vmatpush1.msra.mxu0 0.0
    %263 = vmatprep.subr.mxu0 0.0
    %264 = vmatpush1.msra.mxu0 0.0
    %265 = vmatprep.subr.mxu0 0.0
    %266 = vmatpush1.msra.mxu0 0.0
    %267 = vmatprep.subr.mxu0 0.0
    %268 = vmatpush1.msra.mxu0 0.0
    %269 = vmatprep.subr.mxu0 0.0
    %270 = vmatpush1.msra.mxu0 0.0
    %271 = vmatprep.subr.mxu0 0.0
    %272 = vmatpush1.msra.mxu0 0.0
    %273 = vmatprep.subr.mxu0 0.0
    %274 = vmatpush1.msra.mxu0 0.0
    %275 = vmatprep.subr.mxu0 0.0
    %276 = vmatpush1.msra.mxu0 0.0
    %277 = vmatprep.subr.mxu0 0.0
    %278 = vmatpush1.msra.mxu0 0.0
    %279 = vmatprep.subr.mxu0 0.0
    %280 = vmatpush1.msra.mxu0 0.0
    %281 = vmatprep.subr.mxu0 0.0
    %282 = vmatpush1.msra.mxu0 0.0
    %283 = vmatprep.subr.mxu0 0.0
    %284 = vmatpush1.msra.mxu0 0.0
    %285 = vmatprep.subr.mxu0 0.0
    %286 = vmatpush1.msra.mxu0 0.0
    %287 = vmatprep.subr.mxu0 0.0
    %288 = vmatpush1.msra.mxu0 0.0
    %289 = vmatprep.subr.mxu0 0.0
    %290 = vmatpush1.msra.mxu0 0.0
    %291 = vmatprep.mubr.f32.mxu0 0.0
    %292 = vmatmul.mubr.f32.gmra.mrb[0].mxu0 %v209
    %v293 = vpop.f32.mrb[0].mxu0
    %v294 = vadd.f32 %v190, %v293
    %v295 = vpop.f32.mrb[0].mxu0
    %v296 = vadd.f32 %v190, %v295
    %297 = vmatprep.mubr.f32.mxu0 0.0
    %298 = vmatmul.mubr.f32.gmra.mrb[0].mxu0 %v212
    %v299 = vpop.f32.mrb[0].mxu0
    %v300 = vadd.f32 %v195, %v299
    %v301 = vpop.f32.mrb[0].mxu0
    %v302 = vadd.f32 %v195, %v301
    %303 = vmatprep.mubr.f32.mxu0 0.0
    %304 = vmatmul.mubr.f32.gmra.mrb[0].mxu0 %v215
    %v305 = vpop.f32.mrb[0].mxu0
    %v306 = vadd.f32 %v200, %v305
    %v307 = vpop.f32.mrb[0].mxu0
    %v308 = vadd.f32 %v200, %v307
    %309 = vmatprep.mubr.f32.mxu0 0.0
    %310 = vmatmul.mubr.f32.gmra.mrb[0].mxu0 %v218
    %v311 = vpop.f32.mrb[0].mxu0
    %v312 = vadd.f32 %v205, %v311
    %v313 = vpop.f32.mrb[0].mxu0
    %v314 = vadd.f32 %v205, %v313
    %315 = vdwg.mxu0
    %v316 = vmax.f32 %v294, 0.0
    %v317 = vmax.f32 %v296, 0.0
    %v318 = vmax.f32 %v300, 0.0
    %v319 = vmax.f32 %v302, 0.0
    %v320 = vmax.f32 %v306, 0.0
    %v321 = vmax.f32 %v308, 0.0
    %v322 = vmax.f32 %v312, 0.0
    %v323 = vmax.f32 %v314, 0.0
    %vm324 = vcmask 261120
    %v326 = vsel %vm324, %v42, 0
    %328 = vmatprep.subr.mxu0 %v317
    %329 = vmatpush1.msra.mxu0 %v316
    %330 = vmatprep.subr.mxu0 %v319
    %331 = vmatpush1.msra.mxu0 %v318
    %332 = vmatprep.subr.mxu0 %v321
    %333 = vmatpush1.msra.mxu0 %v320
    %334 = vmatprep.subr.mxu0 %v323
    %335 = vmatpush1.msra.mxu0 %v322
    %336 = vmatprep.subr.mxu0 0.0
    %337 = vmatpush1.msra.mxu0 0.0
    %338 = vmatprep.subr.mxu0 0.0
    %339 = vmatpush1.msra.mxu0 0.0
    %340 = vmatprep.subr.mxu0 0.0
    %341 = vmatpush1.msra.mxu0 0.0
    %342 = vmatprep.subr.mxu0 0.0
    %343 = vmatpush1.msra.mxu0 0.0
    %344 = vmatprep.subr.mxu0 0.0
    %345 = vmatpush1.msra.mxu0 0.0
    %346 = vmatprep.subr.mxu0 0.0
    %347 = vmatpush1.msra.mxu0 0.0
    %348 = vmatprep.subr.mxu0 0.0
    %349 = vmatpush1.msra.mxu0 0.0
    %350 = vmatprep.subr.mxu0 0.0
    %351 = vmatpush1.msra.mxu0 0.0
    %352 = vmatprep.subr.mxu0 0.0
    %353 = vmatpush1.msra.mxu0 0.0
    %354 = vmatprep.subr.mxu0 0.0
    %355 = vmatpush1.msra.mxu0 0.0
    %356 = vmatprep.subr.mxu0 0.0
    %357 = vmatpush1.msra.mxu0 0.0
    %358 = vmatprep.subr.mxu0 0.0
    %359 = vmatpush1.msra.mxu0 0.0
    %360 = vmatprep.subr.mxu0 0.0
    %361 = vmatpush1.msra.mxu0 0.0
    %362 = vmatprep.subr.mxu0 0.0
    %363 = vmatpush1.msra.mxu0 0.0
    %364 = vmatprep.subr.mxu0 0.0
    %365 = vmatpush1.msra.mxu0 0.0
    %366 = vmatprep.subr.mxu0 0.0
    %367 = vmatpush1.msra.mxu0 0.0
    %368 = vmatprep.subr.mxu0 0.0
    %369 = vmatpush1.msra.mxu0 0.0
    %370 = vmatprep.subr.mxu0 0.0
    %371 = vmatpush1.msra.mxu0 0.0
    %372 = vmatprep.subr.mxu0 0.0
    %373 = vmatpush1.msra.mxu0 0.0
    %374 = vmatprep.subr.mxu0 0.0
    %375 = vmatpush1.msra.mxu0 0.0
    %376 = vmatprep.subr.mxu0 0.0
    %377 = vmatpush1.msra.mxu0 0.0
    %378 = vmatprep.subr.mxu0 0.0
    %379 = vmatpush1.msra.mxu0 0.0
    %380 = vmatprep.subr.mxu0 0.0
    %381 = vmatpush1.msra.mxu0 0.0
    %382 = vmatprep.subr.mxu0 0.0
    %383 = vmatpush1.msra.mxu0 0.0
    %384 = vmatprep.subr.mxu0 0.0
    %385 = vmatpush1.msra.mxu0 0.0
    %386 = vmatprep.subr.mxu0 0.0
    %387 = vmatpush1.msra.mxu0 0.0
    %388 = vmatprep.subr.mxu0 0.0
    %389 = vmatpush1.msra.mxu0 0.0
    %390 = vmatprep.subr.mxu0 0.0
    %391 = vmatpush1.msra.mxu0 0.0
    %392 = vmatprep.mubr.f32.mxu0 0.0
    %393 = vmatmul.mubr.f32.gmra.mrb[0].mxu0 %v326
    %v394 = vpop.f32.mrb[0].mxu0
    %v395 = vadd.f32 0.0, %v394
    %v396 = vpop.f32.mrb[0].mxu0
    %v397 = vadd.f32 0.0, %v396
    %398 = vdwg.mxu0
    %400 = vset.pattern.permute.xlu0 0
    %401 = vperm.xlu0 %400, %v47
    %v402 = vpop.permute.xlu0 %401
    %404 = vmatprep.subr.mxu0 %v50
    %405 = vmatpush1.xpose.msra.mxu0 %v49
    %406 = vmatprep.subr.mxu0 %v52
    %407 = vmatpush1.xpose.msra.mxu0 %v51
    %408 = vmatprep.subr.mxu0 %v54
    %409 = vmatpush1.xpose.msra.mxu0 %v53
    %410 = vmatprep.subr.mxu0 %v56
    %411 = vmatpush1.xpose.msra.mxu0 %v55
    %412 = vmatprep.subr.mxu0 %v58
    %413 = vmatpush1.xpose.msra.mxu0 %v57
    %414 = vmatprep.subr.mxu0 %v60
    %415 = vmatpush1.xpose.msra.mxu0 %v59
    %416 = vmatprep.subr.mxu0 %v62
    %417 = vmatpush1.xpose.msra.mxu0 %v61
    %418 = vmatprep.subr.mxu0 %v64
    %419 = vmatpush1.xpose.msra.mxu0 %v63
    %420 = vmatprep.subr.mxu0 %v66
    %421 = vmatpush1.xpose.msra.mxu0 %v65
    %422 = vmatprep.subr.mxu0 %v68
    %423 = vmatpush1.xpose.msra.mxu0 %v67
    %424 = vmatprep.subr.mxu0 %v70
    %425 = vmatpush1.xpose.msra.mxu0 %v69
    %426 = vmatprep.subr.mxu0 %v72
    %427 = vmatpush1.xpose.msra.mxu0 %v71
    %428 = vmatprep.subr.mxu0 %v74
    %429 = vmatpush1.xpose.msra.mxu0 %v73
    %430 = vmatprep.subr.mxu0 %v76
    %431 = vmatpush1.xpose.msra.mxu0 %v75
    %432 = vmatprep.subr.mxu0 %v78
    %433 = vmatpush1.xpose.msra.mxu0 %v77
    %434 = vmatprep.subr.mxu0 %v80
    %435 = vmatpush1.xpose.msra.mxu0 %v79
    %436 = vmatprep.subr.mxu0 %v82
    %437 = vmatpush1.xpose.msra.mxu0 %v81
    %438 = vmatprep.subr.mxu0 %v84
    %439 = vmatpush1.xpose.msra.mxu0 %v83
    %440 = vmatprep.subr.mxu0 %v86
    %441 = vmatpush1.xpose.msra.mxu0 %v85
    %442 = vmatprep.subr.mxu0 %v88
    %443 = vmatpush1.xpose.msra.mxu0 %v87
    %444 = vmatprep.subr.mxu0 %v90
    %445 = vmatpush1.xpose.msra.mxu0 %v89
    %446 = vmatprep.subr.mxu0 %v92
    %447 = vmatpush1.xpose.msra.mxu0 %v91
    %448 = vmatprep.subr.mxu0 %v94
    %449 = vmatpush1.xpose.msra.mxu0 %v93
    %450 = vmatprep.subr.mxu0 %v96
    %451 = vmatpush1.xpose.msra.mxu0 %v95
    %452 = vmatprep.subr.mxu0 %v98
    %453 = vmatpush1.xpose.msra.mxu0 %v97
    %454 = vmatprep.subr.mxu0 %v100
    %455 = vmatpush1.xpose.msra.mxu0 %v99
    %456 = vmatprep.subr.mxu0 %v102
    %457 = vmatpush1.xpose.msra.mxu0 %v101
    %458 = vmatprep.subr.mxu0 %v104
    %459 = vmatpush1.xpose.msra.mxu0 %v103
    %460 = vmatprep.subr.mxu0 %v106
    %461 = vmatpush1.xpose.msra.mxu0 %v105
    %462 = vmatprep.subr.mxu0 %v108
    %463 = vmatpush1.xpose.msra.mxu0 %v107
    %464 = vmatprep.subr.mxu0 %v110
    %465 = vmatpush1.xpose.msra.mxu0 %v109
    %466 = vmatprep.subr.mxu0 %v112
    %467 = vmatpush1.xpose.msra.mxu0 %v111
    %468 = vmatprep.mubr.f32.mxu0 %v397
    %469 = vmatmul.mubr.f32.gmra.mrb[0].mxu0 %v395
    %v470 = vpop.f32.mrb[0].mxu0
    %v471 = vadd.f32 %v402, %v470
    %v472 = vpop.f32.mrb[0].mxu0
    %v473 = vadd.f32 %v402, %v472
    %474 = vdwg.mxu0
    %v475 = vmax.f32 %v471, 0.0
    %v476 = vmax.f32 %v473, 0.0
    %477 = vst [vmem:[#allocation5] sm:$0xff] %v475
    %478 = vst [vmem:[#allocation5 + $0x8] sm:$0xff] %v476
    %s479 = scalar_lea.vmem %s0, 8
    %v480 = vld [vmem:[%s479] sm:$0xff]
    %s481 = scalar_lea.vmem [#allocation2], 512
    %v482 = vld [vmem:[%s481] sm:$0xff]
    %v483 = vld [vmem:[%s481 + $0x8] sm:$0xff]
    %v484 = vld [vmem:[%s481 + $0x10] sm:$0xff]
    %v485 = vld [vmem:[%s481 + $0x18] sm:$0xff]
    %v486 = vld [vmem:[%s481 + $0x20] sm:$0xff]
    %v487 = vld [vmem:[%s481 + $0x28] sm:$0xff]
    %v488 = vld [vmem:[%s481 + $0x30] sm:$0xff]
    %v489 = vld [vmem:[%s481 + $0x38] sm:$0xff]
    %v490 = vld [vmem:[%s481 + $0x40] sm:$0xff]
    %v491 = vld [vmem:[%s481 + $0x48] sm:$0xff]
    %v492 = vld [vmem:[%s481 + $0x50] sm:$0xff]
    %v493 = vld [vmem:[%s481 + $0x58] sm:$0xff]
    %v494 = vld [vmem:[%s481 + $0x60] sm:$0xff]
    %v495 = vld [vmem:[%s481 + $0x68] sm:$0xff]
    %v496 = vld [vmem:[%s481 + $0x70] sm:$0xff]
    %v497 = vld [vmem:[%s481 + $0x78] sm:$0xff]
    %v498 = vld [vmem:[%s481 + $0x80] sm:$0xff]
    %v499 = vld [vmem:[%s481 + $0x88] sm:$0xff]
    %v500 = vld [vmem:[%s481 + $0x90] sm:$0xff]
    %v501 = vld [vmem:[%s481 + $0x98] sm:$0xff]
    %v502 = vld [vmem:[%s481 + $0xa0] sm:$0xff]
    %v503 = vld [vmem:[%s481 + $0xa8] sm:$0xff]
    %v504 = vld [vmem:[%s481 + $0xb0] sm:$0xff]
    %v505 = vld [vmem:[%s481 + $0xb8] sm:$0xff]
    %v506 = vld [vmem:[%s481 + $0xc0] sm:$0xff]
    %v507 = vld [vmem:[%s481 + $0xc8] sm:$0xff]
    %v508 = vld [vmem:[%s481 + $0xd0] sm:$0xff]
    %v509 = vld [vmem:[%s481 + $0xd8] sm:$0xff]
    %v510 = vld [vmem:[%s481 + $0xe0] sm:$0xff]
    %v511 = vld [vmem:[%s481 + $0xe8] sm:$0xff]
    %v512 = vld [vmem:[%s481 + $0xf0] sm:$0xff]
    %v513 = vld [vmem:[%s481 + $0xf8] sm:$0xff]
    %v514 = vld [vmem:[%s481 + $0x100] sm:$0xff]
    %v515 = vld [vmem:[%s481 + $0x108] sm:$0xff]
    %v516 = vld [vmem:[%s481 + $0x110] sm:$0xff]
    %v517 = vld [vmem:[%s481 + $0x118] sm:$0xff]
    %v518 = vld [vmem:[%s481 + $0x120] sm:$0xff]
    %v519 = vld [vmem:[%s481 + $0x128] sm:$0xff]
    %v520 = vld [vmem:[%s481 + $0x130] sm:$0xff]
    %v521 = vld [vmem:[%s481 + $0x138] sm:$0xff]
    %v522 = vld [vmem:[%s481 + $0x140] sm:$0xff]
    %v523 = vld [vmem:[%s481 + $0x148] sm:$0xff]
    %v524 = vld [vmem:[%s481 + $0x150] sm:$0xff]
    %v525 = vld [vmem:[%s481 + $0x158] sm:$0xff]
    %v526 = vld [vmem:[%s481 + $0x160] sm:$0xff]
    %v527 = vld [vmem:[%s481 + $0x168] sm:$0xff]
    %v528 = vld [vmem:[%s481 + $0x170] sm:$0xff]
    %v529 = vld [vmem:[%s481 + $0x178] sm:$0xff]
    %v530 = vld [vmem:[%s481 + $0x180] sm:$0xff]
    %v531 = vld [vmem:[%s481 + $0x188] sm:$0xff]
    %v532 = vld [vmem:[%s481 + $0x190] sm:$0xff]
    %v533 = vld [vmem:[%s481 + $0x198] sm:$0xff]
    %v534 = vld [vmem:[%s481 + $0x1a0] sm:$0xff]
    %v535 = vld [vmem:[%s481 + $0x1a8] sm:$0xff]
    %v536 = vld [vmem:[%s481 + $0x1b0] sm:$0xff]
    %v537 = vld [vmem:[%s481 + $0x1b8] sm:$0xff]
    %v538 = vld [vmem:[%s481 + $0x1c0] sm:$0xff]
    %v539 = vld [vmem:[%s481 + $0x1c8] sm:$0xff]
    %v540 = vld [vmem:[%s481 + $0x1d0] sm:$0xff]
    %v541 = vld [vmem:[%s481 + $0x1d8] sm:$0xff]
    %v542 = vld [vmem:[%s481 + $0x1e0] sm:$0xff]
    %v543 = vld [vmem:[%s481 + $0x1e8] sm:$0xff]
    %v544 = vld [vmem:[%s481 + $0x1f0] sm:$0xff]
    %v545 = vld [vmem:[%s481 + $0x1f8] sm:$0xff]
    %v547 = vcombine.high %v480, %v480
    %549 = vmatprep.subr.mxu0 %v483
    %550 = vmatpush1.xpose.msra.mxu0 %v482
    %551 = vmatprep.subr.mxu0 %v485
    %552 = vmatpush1.xpose.msra.mxu0 %v484
    %553 = vmatprep.subr.mxu0 %v487
    %554 = vmatpush1.xpose.msra.mxu0 %v486
    %555 = vmatprep.subr.mxu0 %v489
    %556 = vmatpush1.xpose.msra.mxu0 %v488
    %557 = vmatprep.subr.mxu0 %v491
    %558 = vmatpush1.xpose.msra.mxu0 %v490
    %559 = vmatprep.subr.mxu0 %v493
    %560 = vmatpush1.xpose.msra.mxu0 %v492
    %561 = vmatprep.subr.mxu0 %v495
    %562 = vmatpush1.xpose.msra.mxu0 %v494
    %563 = vmatprep.subr.mxu0 %v497
    %564 = vmatpush1.xpose.msra.mxu0 %v496
    %565 = vmatprep.subr.mxu0 %v499
    %566 = vmatpush1.xpose.msra.mxu0 %v498
    %567 = vmatprep.subr.mxu0 %v501
    %568 = vmatpush1.xpose.msra.mxu0 %v500
    %569 = vmatprep.subr.mxu0 %v503
    %570 = vmatpush1.xpose.msra.mxu0 %v502
    %571 = vmatprep.subr.mxu0 %v505
    %572 = vmatpush1.xpose.msra.mxu0 %v504
    %573 = vmatprep.subr.mxu0 %v507
    %574 = vmatpush1.xpose.msra.mxu0 %v506
    %575 = vmatprep.subr.mxu0 %v509
    %576 = vmatpush1.xpose.msra.mxu0 %v508
    %577 = vmatprep.subr.mxu0 %v511
    %578 = vmatpush1.xpose.msra.mxu0 %v510
    %579 = vmatprep.subr.mxu0 %v513
    %580 = vmatpush1.xpose.msra.mxu0 %v512
    %581 = vmatprep.subr.mxu0 %v515
    %582 = vmatpush1.xpose.msra.mxu0 %v514
    %583 = vmatprep.subr.mxu0 %v517
    %584 = vmatpush1.xpose.msra.mxu0 %v516
    %585 = vmatprep.subr.mxu0 %v519
    %586 = vmatpush1.xpose.msra.mxu0 %v518
    %587 = vmatprep.subr.mxu0 %v521
    %588 = vmatpush1.xpose.msra.mxu0 %v520
    %589 = vmatprep.subr.mxu0 %v523
    %590 = vmatpush1.xpose.msra.mxu0 %v522
    %591 = vmatprep.subr.mxu0 %v525
    %592 = vmatpush1.xpose.msra.mxu0 %v524
    %593 = vmatprep.subr.mxu0 %v527
    %594 = vmatpush1.xpose.msra.mxu0 %v526
    %595 = vmatprep.subr.mxu0 %v529
    %596 = vmatpush1.xpose.msra.mxu0 %v528
    %597 = vmatprep.subr.mxu0 %v531
    %598 = vmatpush1.xpose.msra.mxu0 %v530
    %599 = vmatprep.subr.mxu0 %v533
    %600 = vmatpush1.xpose.msra.mxu0 %v532
    %601 = vmatprep.subr.mxu0 %v535
    %602 = vmatpush1.xpose.msra.mxu0 %v534
    %603 = vmatprep.subr.mxu0 %v537
    %604 = vmatpush1.xpose.msra.mxu0 %v536
    %605 = vmatprep.subr.mxu0 %v539
    %606 = vmatpush1.xpose.msra.mxu0 %v538
    %607 = vmatprep.subr.mxu0 %v541
    %608 = vmatpush1.xpose.msra.mxu0 %v540
    %609 = vmatprep.subr.mxu0 %v543
    %610 = vmatpush1.xpose.msra.mxu0 %v542
    %611 = vmatprep.subr.mxu0 %v545
    %612 = vmatpush1.xpose.msra.mxu0 %v544
    %613 = vmatprep.mubr.f32.mxu0 %v547
    %614 = vmatmul.mubr.f32.gmra.mrb[0].mxu0 %v480
    %v615 = vpop.f32.mrb[0].mxu0
    %v616 = vadd.f32 0.0, %v615
    %v617 = vpop.f32.mrb[0].mxu0
    %v618 = vadd.f32 0.0, %v617
    %619 = vdwg.mxu0
    %v621 = vsel %vm220, %v616, 0
    %v624 = vsel %vm220, %v618, 0
    %626 = vmatprep.subr.mxu0 %v624
    %627 = vmatpush1.msra.mxu0 %v621
    %628 = vmatprep.subr.mxu0 0.0
    %629 = vmatpush1.msra.mxu0 0.0
    %630 = vmatprep.subr.mxu0 0.0
    %631 = vmatpush1.msra.mxu0 0.0
    %632 = vmatprep.subr.mxu0 0.0
    %633 = vmatpush1.msra.mxu0 0.0
    %634 = vmatprep.subr.mxu0 0.0
    %635 = vmatpush1.msra.mxu0 0.0
    %636 = vmatprep.subr.mxu0 0.0
    %637 = vmatpush1.msra.mxu0 0.0
    %638 = vmatprep.subr.mxu0 0.0
    %639 = vmatpush1.msra.mxu0 0.0
    %640 = vmatprep.subr.mxu0 0.0
    %641 = vmatpush1.msra.mxu0 0.0
    %642 = vmatprep.subr.mxu0 0.0
    %643 = vmatpush1.msra.mxu0 0.0
    %644 = vmatprep.subr.mxu0 0.0
    %645 = vmatpush1.msra.mxu0 0.0
    %646 = vmatprep.subr.mxu0 0.0
    %647 = vmatpush1.msra.mxu0 0.0
    %648 = vmatprep.subr.mxu0 0.0
    %649 = vmatpush1.msra.mxu0 0.0
    %650 = vmatprep.subr.mxu0 0.0
    %651 = vmatpush1.msra.mxu0 0.0
    %652 = vmatprep.subr.mxu0 0.0
    %653 = vmatpush1.msra.mxu0 0.0
    %654 = vmatprep.subr.mxu0 0.0
    %655 = vmatpush1.msra.mxu0 0.0
    %656 = vmatprep.subr.mxu0 0.0
    %657 = vmatpush1.msra.mxu0 0.0
    %658 = vmatprep.subr.mxu0 0.0
    %659 = vmatpush1.msra.mxu0 0.0
    %660 = vmatprep.subr.mxu0 0.0
    %661 = vmatpush1.msra.mxu0 0.0
    %662 = vmatprep.subr.mxu0 0.0
    %663 = vmatpush1.msra.mxu0 0.0
    %664 = vmatprep.subr.mxu0 0.0
    %665 = vmatpush1.msra.mxu0 0.0
    %666 = vmatprep.subr.mxu0 0.0
    %667 = vmatpush1.msra.mxu0 0.0
    %668 = vmatprep.subr.mxu0 0.0
    %669 = vmatpush1.msra.mxu0 0.0
    %670 = vmatprep.subr.mxu0 0.0
    %671 = vmatpush1.msra.mxu0 0.0
    %672 = vmatprep.subr.mxu0 0.0
    %673 = vmatpush1.msra.mxu0 0.0
    %674 = vmatprep.subr.mxu0 0.0
    %675 = vmatpush1.msra.mxu0 0.0
    %676 = vmatprep.subr.mxu0 0.0
    %677 = vmatpush1.msra.mxu0 0.0
    %678 = vmatprep.subr.mxu0 0.0
    %679 = vmatpush1.msra.mxu0 0.0
    %680 = vmatprep.subr.mxu0 0.0
    %681 = vmatpush1.msra.mxu0 0.0
    %682 = vmatprep.subr.mxu0 0.0
    %683 = vmatpush1.msra.mxu0 0.0
    %684 = vmatprep.subr.mxu0 0.0
    %685 = vmatpush1.msra.mxu0 0.0
    %686 = vmatprep.subr.mxu0 0.0
    %687 = vmatpush1.msra.mxu0 0.0
    %688 = vmatprep.subr.mxu0 0.0
    %689 = vmatpush1.msra.mxu0 0.0
    %690 = vmatprep.mubr.f32.mxu0 0.0
    %691 = vmatmul.mubr.f32.gmra.mrb[0].mxu0 %v209
    %v692 = vpop.f32.mrb[0].mxu0
    %v693 = vadd.f32 %v190, %v692
    %v694 = vpop.f32.mrb[0].mxu0
    %v695 = vadd.f32 %v190, %v694
    %696 = vmatprep.mubr.f32.mxu0 0.0
    %697 = vmatmul.mubr.f32.gmra.mrb[0].mxu0 %v212
    %v698 = vpop.f32.mrb[0].mxu0
    %v699 = vadd.f32 %v195, %v698
    %v700 = vpop.f32.mrb[0].mxu0
    %v701 = vadd.f32 %v195, %v700
    %702 = vmatprep.mubr.f32.mxu0 0.0
    %703 = vmatmul.mubr.f32.gmra.mrb[0].mxu0 %v215
    %v704 = vpop.f32.mrb[0].mxu0
    %v705 = vadd.f32 %v200, %v704
    %v706 = vpop.f32.mrb[0].mxu0
    %v707 = vadd.f32 %v200, %v706
    %708 = vmatprep.mubr.f32.mxu0 0.0
    %709 = vmatmul.mubr.f32.gmra.mrb[0].mxu0 %v218
    %v710 = vpop.f32.mrb[0].mxu0
    %v711 = vadd.f32 %v205, %v710
    %v712 = vpop.f32.mrb[0].mxu0
    %v713 = vadd.f32 %v205, %v712
    %714 = vdwg.mxu0
    %v715 = vmax.f32 %v693, 0.0
    %v716 = vmax.f32 %v695, 0.0
    %v717 = vmax.f32 %v699, 0.0
    %v718 = vmax.f32 %v701, 0.0
    %v719 = vmax.f32 %v705, 0.0
    %v720 = vmax.f32 %v707, 0.0
    %v721 = vmax.f32 %v711, 0.0
    %v722 = vmax.f32 %v713, 0.0
    %723 = vmatprep.subr.mxu0 %v716
    %724 = vmatpush1.msra.mxu0 %v715
    %725 = vmatprep.subr.mxu0 %v718
    %726 = vmatpush1.msra.mxu0 %v717
    %727 = vmatprep.subr.mxu0 %v720
    %728 = vmatpush1.msra.mxu0 %v719
    %729 = vmatprep.subr.mxu0 %v722
    %730 = vmatpush1.msra.mxu0 %v721
    %731 = vmatprep.subr.mxu0 0.0
    %732 = vmatpush1.msra.mxu0 0.0
    %733 = vmatprep.subr.mxu0 0.0
    %734 = vmatpush1.msra.mxu0 0.0
    %735 = vmatprep.subr.mxu0 0.0
    %736 = vmatpush1.msra.mxu0 0.0
    %737 = vmatprep.subr.mxu0 0.0
    %738 = vmatpush1.msra.mxu0 0.0
    %739 = vmatprep.subr.mxu0 0.0
    %740 = vmatpush1.msra.mxu0 0.0
    %741 = vmatprep.subr.mxu0 0.0
    %742 = vmatpush1.msra.mxu0 0.0
    %743 = vmatprep.subr.mxu0 0.0
    %744 = vmatpush1.msra.mxu0 0.0
    %745 = vmatprep.subr.mxu0 0.0
    %746 = vmatpush1.msra.mxu0 0.0
    %747 = vmatprep.subr.mxu0 0.0
    %748 = vmatpush1.msra.mxu0 0.0
    %749 = vmatprep.subr.mxu0 0.0
    %750 = vmatpush1.msra.mxu0 0.0
    %751 = vmatprep.subr.mxu0 0.0
    %752 = vmatpush1.msra.mxu0 0.0
    %753 = vmatprep.subr.mxu0 0.0
    %754 = vmatpush1.msra.mxu0 0.0
    %755 = vmatprep.subr.mxu0 0.0
    %756 = vmatpush1.msra.mxu0 0.0
    %757 = vmatprep.subr.mxu0 0.0
    %758 = vmatpush1.msra.mxu0 0.0
    %759 = vmatprep.subr.mxu0 0.0
    %760 = vmatpush1.msra.mxu0 0.0
    %761 = vmatprep.subr.mxu0 0.0
    %762 = vmatpush1.msra.mxu0 0.0
    %763 = vmatprep.subr.mxu0 0.0
    %764 = vmatpush1.msra.mxu0 0.0
    %765 = vmatprep.subr.mxu0 0.0
    %766 = vmatpush1.msra.mxu0 0.0
    %767 = vmatprep.subr.mxu0 0.0
    %768 = vmatpush1.msra.mxu0 0.0
    %769 = vmatprep.subr.mxu0 0.0
    %770 = vmatpush1.msra.mxu0 0.0
    %771 = vmatprep.subr.mxu0 0.0
    %772 = vmatpush1.msra.mxu0 0.0
    %773 = vmatprep.subr.mxu0 0.0
    %774 = vmatpush1.msra.mxu0 0.0
    %775 = vmatprep.subr.mxu0 0.0
    %776 = vmatpush1.msra.mxu0 0.0
    %777 = vmatprep.subr.mxu0 0.0
    %778 = vmatpush1.msra.mxu0 0.0
    %779 = vmatprep.subr.mxu0 0.0
    %780 = vmatpush1.msra.mxu0 0.0
    %781 = vmatprep.subr.mxu0 0.0
    %782 = vmatpush1.msra.mxu0 0.0
    %783 = vmatprep.subr.mxu0 0.0
    %784 = vmatpush1.msra.mxu0 0.0
    %785 = vmatprep.subr.mxu0 0.0
    %786 = vmatpush1.msra.mxu0 0.0
    %787 = vmatprep.mubr.f32.mxu0 0.0
    %788 = vmatmul.mubr.f32.gmra.mrb[0].mxu0 %v326
    %v789 = vpop.f32.mrb[0].mxu0
    %v790 = vadd.f32 0.0, %v789
    %v791 = vpop.f32.mrb[0].mxu0
    %v792 = vadd.f32 0.0, %v791
    %793 = vdwg.mxu0
    %794 = vmatprep.subr.mxu0 %v483
    %795 = vmatpush1.xpose.msra.mxu0 %v482
    %796 = vmatprep.subr.mxu0 %v485
    %797 = vmatpush1.xpose.msra.mxu0 %v484
    %798 = vmatprep.subr.mxu0 %v487
    %799 = vmatpush1.xpose.msra.mxu0 %v486
    %800 = vmatprep.subr.mxu0 %v489
    %801 = vmatpush1.xpose.msra.mxu0 %v488
    %802 = vmatprep.subr.mxu0 %v491
    %803 = vmatpush1.xpose.msra.mxu0 %v490
    %804 = vmatprep.subr.mxu0 %v493
    %805 = vmatpush1.xpose.msra.mxu0 %v492
    %806 = vmatprep.subr.mxu0 %v495
    %807 = vmatpush1.xpose.msra.mxu0 %v494
    %808 = vmatprep.subr.mxu0 %v497
    %809 = vmatpush1.xpose.msra.mxu0 %v496
    %810 = vmatprep.subr.mxu0 %v499
    %811 = vmatpush1.xpose.msra.mxu0 %v498
    %812 = vmatprep.subr.mxu0 %v501
    %813 = vmatpush1.xpose.msra.mxu0 %v500
    %814 = vmatprep.subr.mxu0 %v503
    %815 = vmatpush1.xpose.msra.mxu0 %v502
    %816 = vmatprep.subr.mxu0 %v505
    %817 = vmatpush1.xpose.msra.mxu0 %v504
    %818 = vmatprep.subr.mxu0 %v507
    %819 = vmatpush1.xpose.msra.mxu0 %v506
    %820 = vmatprep.subr.mxu0 %v509
    %821 = vmatpush1.xpose.msra.mxu0 %v508
    %822 = vmatprep.subr.mxu0 %v511
    %823 = vmatpush1.xpose.msra.mxu0 %v510
    %824 = vmatprep.subr.mxu0 %v513
    %825 = vmatpush1.xpose.msra.mxu0 %v512
    %826 = vmatprep.subr.mxu0 %v515
    %827 = vmatpush1.xpose.msra.mxu0 %v514
    %828 = vmatprep.subr.mxu0 %v517
    %829 = vmatpush1.xpose.msra.mxu0 %v516
    %830 = vmatprep.subr.mxu0 %v519
    %831 = vmatpush1.xpose.msra.mxu0 %v518
    %832 = vmatprep.subr.mxu0 %v521
    %833 = vmatpush1.xpose.msra.mxu0 %v520
    %834 = vmatprep.subr.mxu0 %v523
    %835 = vmatpush1.xpose.msra.mxu0 %v522
    %836 = vmatprep.subr.mxu0 %v525
    %837 = vmatpush1.xpose.msra.mxu0 %v524
    %838 = vmatprep.subr.mxu0 %v527
    %839 = vmatpush1.xpose.msra.mxu0 %v526
    %840 = vmatprep.subr.mxu0 %v529
    %841 = vmatpush1.xpose.msra.mxu0 %v528
    %842 = vmatprep.subr.mxu0 %v531
    %843 = vmatpush1.xpose.msra.mxu0 %v530
    %844 = vmatprep.subr.mxu0 %v533
    %845 = vmatpush1.xpose.msra.mxu0 %v532
    %846 = vmatprep.subr.mxu0 %v535
    %847 = vmatpush1.xpose.msra.mxu0 %v534
    %848 = vmatprep.subr.mxu0 %v537
    %849 = vmatpush1.xpose.msra.mxu0 %v536
    %850 = vmatprep.subr.mxu0 %v539
    %851 = vmatpush1.xpose.msra.mxu0 %v538
    %852 = vmatprep.subr.mxu0 %v541
    %853 = vmatpush1.xpose.msra.mxu0 %v540
    %854 = vmatprep.subr.mxu0 %v543
    %855 = vmatpush1.xpose.msra.mxu0 %v542
    %856 = vmatprep.subr.mxu0 %v545
    %857 = vmatpush1.xpose.msra.mxu0 %v544
    %858 = vmatprep.mubr.f32.mxu0 %v792
    %859 = vmatmul.mubr.f32.gmra.mrb[0].mxu0 %v790
    %v860 = vpop.f32.mrb[0].mxu0
    %v861 = vadd.f32 %v402, %v860
    %v862 = vpop.f32.mrb[0].mxu0
    %v863 = vadd.f32 %v402, %v862
    %864 = vdwg.mxu0
    %v865 = vmax.f32 %v861, 0.0
    %v866 = vmax.f32 %v863, 0.0
    %s867 = scalar_lea.vmem [#allocation5], 16
    %868 = vst [vmem:[%s867] sm:$0xff] %v865
    %869 = vst [vmem:[%s867 + $0x8] sm:$0xff] %v866
    // Predicated region
    $region30: #{tpu_custom_call.1} parent=1 // pred_check
      _
    $region31: #{tpu_custom_call.1} parent=1 // pred_check_branch
      %871 = sbr.rel (0) target = $region33
    $region32: #{tpu_custom_call.1} parent=1 // pred_region
      %s873 = ssub.s32 512, 512
      %874 = vsyncadd [#allocation4], %s873
      %s875 = sshll.u32 [#allocation5], 4
      %s876 = int_to_ptr.vmem [resolvable:$true] %s875
      %881 = dma.vmem_to_hbm [thread:$0]  %s876, 512, %s6, [#allocation4], 256, 256, 16
    $region33: #{tpu_custom_call.1} parent=1 // pred_fallthru
      _
    // Predicated region
    $region34: #{tpu_custom_call.1} parent=1 // pred_check
      _
    $region35: #{tpu_custom_call.1} parent=1 // pred_check_branch
      %883 = sbr.rel (0) target = $region37
    $region36: #{tpu_custom_call.1} parent=1 // pred_region
      %884 = dma.done [#allocation4], 512
    $region37: #{tpu_custom_call.1} parent=1 // pred_fallthru
      _
    %885 = vsyncpa [#allocation3], 1
    %886 = vsyncpa [#allocation4], 1

</llo_original>
